<compile_context>
chip_gen: v5e
topology: v5e:2x2
jax: 0.10.0
libtpu: 0.0.40
codegen_flags: <defaults>
</compile_context>

<pallas_src>
import jax
import jax.numpy as jnp
from jax import lax
from jax.experimental import pallas as pl
from jax.experimental.pallas import tpu as pltpu


LANE = 128
VMEM_LIMIT = 48 * 1024 * 1024  # fits v7x's 64 MiB/TC; v5e/v6e could go higher


def _round_up(x, m):
    return ((x + m - 1) // m) * m


def _choose_point_tiling(n):
    """Return (n_pad, TN, TQ, TK).

    Guarantees: every tile divides n_pad; tiles are multiples of 8 (or of 128
    for large n) so blocks obey the (8,128) rule; TQ is either == n_pad or a
    multiple of 128 so the transposed (C, TQ) output block stays lane-dense.
    """
    n8 = _round_up(n, 8)
    if n8 % 128 != 0 and n8 <= 512:
        return n8, n8, n8, n8            # small N: single tile per axis
    n_pad = n8 if n8 % 128 == 0 else _round_up(n, 128)

    def pick(max_tile):
        best = 128
        for t in range(128, min(n_pad, max_tile) + 1, 128):
            if n_pad % t == 0:
                best = t
        return best

    return n_pad, pick(512), pick(256), pick(512)


# ------------------------------ wrapper ----------------------------------- #

def shape_context_forward(x, params, ratio=8, eps=1e-5,
                          matmul_dtype=jnp.bfloat16):
    """x: [B, C, N] (PyTorch layout) -> [B, C, N]."""
    B, C, N = x.shape
    Cr = C // ratio
    Cin_p = _round_up(C, LANE)    # padded input channels
    Crp = _round_up(Cr, LANE)     # padded q/k channels
    Cp = _round_up(C, LANE)       # padded v channels
    Ctot = 2 * Crp + Cp

    # ---- fold BN (inference) into conv weights + per-channel bias, pad ----
    def fold(w, gamma, beta, mean, var, cout_p):
        cout = w.shape[1]
        scale = gamma / jnp.sqrt(var + eps)
        shift = beta - mean * scale
        wf = w * scale[None, :]
        wp = jnp.zeros((Cin_p, cout_p), jnp.float32).at[:C, :cout].set(wf)
        bp = jnp.zeros((1, cout_p), jnp.float32).at[0, :cout].set(shift)
        return wp, bp

    w1p, b1p = fold(params["w1"], params["g1"], params["b1"],
                    params["m1"], params["v1"], Crp)
    w2p, b2p = fold(params["w2"], params["g2"], params["b2"],
                    params["m2"], params["v2"], Crp)
    w3p, b3p = fold(params["w3"], params["g3"], params["b3"],
                    params["m3"], params["v3"], Cp)
    w_qkv = jnp.concatenate([w1p, w2p, w3p], axis=1).astype(matmul_dtype)
    b_qkv = jnp.concatenate([b1p, b2p, b3p], axis=1)          # bias stays f32

    N_pad, TN, TQ, TK = _choose_point_tiling(N)

    # channel-last, zero-padded input, already in the matmul dtype
    x_t = jnp.transpose(x, (0, 2, 1))                          # [B, N, C]
    x_t = jnp.pad(x_t, ((0, 0), (0, N_pad - N), (0, Cin_p - C)))
    x_t = x_t.astype(matmul_dtype)                             # [B, N_pad, Cin_p]

    # ---- fused q/k/v projection: one wide matmul, BN+ReLU folded, 3 outputs ----
    def proj_kernel(x_ref, w_ref, b_ref, q_ref, k_ref, v_ref):
        z = jnp.dot(x_ref[...], w_ref[...], preferred_element_type=jnp.float32)
        z = jnp.maximum(z + b_ref[...], 0.0)
        q_ref[...] = z[:, :Crp].astype(q_ref.dtype)
        k_ref[...] = z[:, Crp:2 * Crp].astype(k_ref.dtype)
        v_ref[...] = z[:, 2 * Crp:].astype(v_ref.dtype)

    # NOTE: weight/bias blocks have a constant block index so they are only
    # fetched once; pl.Buffered(1) could halve their VMEM double-buffer but is
    # skipped here for portability.
    q, k, v = pl.pallas_call(
        proj_kernel,
        out_shape=(
            jax.ShapeDtypeStruct((B, N_pad, Crp), matmul_dtype),
            jax.ShapeDtypeStruct((B, N_pad, Crp), matmul_dtype),
            jax.ShapeDtypeStruct((B, N_pad, Cp), matmul_dtype),
        ),
        grid=(B, N_pad // TN),
        in_specs=[
            pl.BlockSpec((pl.Squeezed(), TN, Cin_p), lambda b, n: (b, n, 0)),
            pl.BlockSpec((Cin_p, Ctot), lambda b, n: (0, 0)),
            pl.BlockSpec((1, Ctot), lambda b, n: (0, 0)),
        ],
        out_specs=(
            pl.BlockSpec((pl.Squeezed(), TN, Crp), lambda b, n: (b, n, 0)),
            pl.BlockSpec((pl.Squeezed(), TN, Crp), lambda b, n: (b, n, 0)),
            pl.BlockSpec((pl.Squeezed(), TN, Cp), lambda b, n: (b, n, 0)),
        ),
        compiler_params=pltpu.CompilerParams(
            dimension_semantics=("parallel", "parallel"),
            vmem_limit_bytes=VMEM_LIMIT),
    )(x_t, w_qkv, b_qkv)

    needs_mask = N_pad > N

    # ---- flash-style attention: out = softmax(q k^T) v + v, written [B,C,N] ----
    def attn_kernel(q_ref, k_ref, v_ref, vres_ref, o_ref, m_sc, l_sc, acc_sc):
        kj = pl.program_id(2)

        @pl.when(kj == 0)
        def _():
            m_sc[...] = jnp.full_like(m_sc, -jnp.inf)
            l_sc[...] = jnp.zeros_like(l_sc)
            acc_sc[...] = jnp.zeros_like(acc_sc)

        # s[i, j] = q_i . k_j  (contract channel axis, f32 accumulation)
        s = lax.dot_general(q_ref[...], k_ref[...],
                            (((1,), (1,)), ((), ())),
                            preferred_element_type=jnp.float32)     # (TQ, TK)
        if needs_mask:  # static Python branch; only traced when N was padded
            col = kj * TK + lax.broadcasted_iota(jnp.int32, (TQ, TK), 1)
            s = jnp.where(col < N, s, -jnp.inf)

        m_prev = m_sc[...]
        m_new = jnp.maximum(m_prev, jnp.max(s, axis=-1, keepdims=True))
        alpha = jnp.exp(m_prev - m_new)
        p = jnp.exp(s - m_new)
        l_sc[...] = alpha * l_sc[...] + jnp.sum(p, axis=-1, keepdims=True)
        acc_sc[...] = alpha * acc_sc[...] + jnp.dot(
            p.astype(v_ref.dtype), v_ref[...],
            preferred_element_type=jnp.float32)
        m_sc[...] = m_new

        @pl.when(kj == pl.num_programs(2) - 1)
        def _():
            inv_l = pl.reciprocal(l_sc[...], approx=True)
            res = acc_sc[...] * inv_l + vres_ref[...].astype(jnp.float32)
            # Transpose the (TQ, Cp) tile once per q-tile and strip the padded
            # channels here, so no wrapper-side slice/transpose pass is needed.
            res_t = jnp.transpose(res)                              # (Cp, TQ)
            o_ref[...] = res_t[:C, :].astype(o_ref.dtype)

    out = pl.pallas_call(
        attn_kernel,
        out_shape=jax.ShapeDtypeStruct((B, C, N_pad), x.dtype),
        grid=(B, N_pad // TQ, N_pad // TK),
        in_specs=[
            pl.BlockSpec((pl.Squeezed(), TQ, Crp), lambda b, qi, kj: (b, qi, 0)),
            pl.BlockSpec((pl.Squeezed(), TK, Crp), lambda b, qi, kj: (b, kj, 0)),
            pl.BlockSpec((pl.Squeezed(), TK, Cp), lambda b, qi, kj: (b, kj, 0)),
            # residual: same HBM array as v, tiled over the q rows
            pl.BlockSpec((pl.Squeezed(), TQ, Cp), lambda b, qi, kj: (b, qi, 0)),
        ],
        out_specs=pl.BlockSpec((pl.Squeezed(), C, TQ),
                               lambda b, qi, kj: (b, 0, qi)),
        scratch_shapes=[
            pltpu.VMEM((TQ, 1), jnp.float32),     # running max m
            pltpu.VMEM((TQ, 1), jnp.float32),     # running denom l
            pltpu.VMEM((TQ, Cp), jnp.float32),    # output accumulator
        ],
        compiler_params=pltpu.CompilerParams(
            dimension_semantics=("parallel", "parallel", "arbitrary"),
            vmem_limit_bytes=VMEM_LIMIT),
    )(q, k, v, v)

    return out[:, :, :N] if N_pad > N else out


# --------------------------- pure-JAX reference --------------------------- #

def shape_context_ref(x, params, ratio=8, eps=1e-5):
    x_t = jnp.transpose(x, (0, 2, 1))  # [B, N, C]

    def branch(w, gamma, beta, mean, var):
        z = jnp.einsum("bnc,co->bno", x_t, w,
                       precision=lax.Precision.HIGHEST)
        scale = gamma / jnp.sqrt(var + eps)
        shift = beta - mean * scale
        return jax.nn.relu(z * scale[None, None, :] + shift[None, None, :])

    q = branch(params["w1"], params["g1"], params["b1"], params["m1"], params["v1"])
    k = branch(params["w2"], params["g2"], params["b2"], params["m2"], params["v2"])
    v = branch(params["w3"], params["g3"], params["b3"], params["m3"], params["v3"])
    scores = jnp.einsum("bnc,bmc->bnm", q, k, precision=lax.Precision.HIGHEST)
    attn = jax.nn.softmax(scores, axis=-1)
    out = jnp.einsum("bnm,bmc->bnc", attn, v,
                     precision=lax.Precision.HIGHEST) + v
    return jnp.transpose(out, (0, 2, 1))


# ------------------------ deterministic parameters ------------------------ #

def init_params(key, C, ratio=8):
    Cr = C // ratio
    ks = jax.random.split(key, 6)

    def conv_w(k, cin, cout):
        # Conv1d(cin, cout, 1, bias=False), stored channel-last as [cin, cout]
        return 0.1 * jax.random.normal(k, (cin, cout), jnp.float32)

    def bn(k, c):
        k1, k2, k3, k4 = jax.random.split(k, 4)
        gamma = 1.0 + 0.1 * jax.random.normal(k1, (c,), jnp.float32)
        beta = 0.1 * jax.random.normal(k2, (c,), jnp.float32)
        mean = 0.1 * jax.random.normal(k3, (c,), jnp.float32)
        var = 1.0 + 0.1 * jnp.abs(jax.random.normal(k4, (c,), jnp.float32))
        return gamma, beta, mean, var

    w1 = conv_w(ks[0], C, Cr); g1, b1, m1, v1 = bn(ks[1], Cr)
    w2 = conv_w(ks[2], C, Cr); g2, b2, m2, v2 = bn(ks[3], Cr)
    w3 = conv_w(ks[4], C, C);  g3, b3, m3, v3 = bn(ks[5], C)
    return dict(w1=w1, g1=g1, b1=b1, m1=m1, v1=v1,
                w2=w2, g2=g2, b2=b2, m2=m2, v2=v2,
                w3=w3, g3=g3, b3=b3, m3=m3, v3=v3)


if __name__ == "__main__":
    B, C, N = 2, 32, 128        # batch, channels (ratio=8 -> C//8=4), points
    key = jax.random.PRNGKey(0)
    kx, kp = jax.random.split(key)
    x = jax.random.normal(kx, (B, C, N), jnp.float32)
    params = init_params(kp, C, ratio=8)

    ref = shape_context_ref(x, params, ratio=8)

    # default path: bf16 MXU operands, f32 accumulation / softmax math
    out = shape_context_forward(x, params, ratio=8)
    out = jax.block_until_ready(out)
    assert out.shape == (B, C, N)
    assert bool(jnp.all(jnp.isfinite(out)))
    err_bf16 = float(jnp.max(jnp.abs(out - ref)))
    assert err_bf16 < 1e-1, f"bf16 max abs err vs reference: {err_bf16}"

    # f32 operand path: tighter numerical parity check
    out_f32 = shape_context_forward(x, params, ratio=8, matmul_dtype=jnp.float32)
    out_f32 = jax.block_until_ready(out_f32)
    err_f32 = float(jnp.max(jnp.abs(out_f32 - ref)))
    assert err_f32 < 3e-2, f"f32 max abs err vs reference: {err_f32}"

    print("KERNEL_OK")
</pallas_src>

<mosaic_0001>
module attributes {stable_mosaic.version = 11 : i64} {
  func.func @proj_kernel(%arg0: i32, %arg1: i32, %arg2: memref<1x128x128xbf16, #tpu.memory_space<vmem>>, %arg3: memref<128x384xbf16, #tpu.memory_space<vmem>>, %arg4: memref<1x384xf32, #tpu.memory_space<vmem>>, %arg5: memref<1x128x128xbf16, #tpu.memory_space<vmem>>, %arg6: memref<1x128x128xbf16, #tpu.memory_space<vmem>>, %arg7: memref<1x128x128xbf16, #tpu.memory_space<vmem>>) attributes {dimension_semantics = [#tpu.dimension_semantics<parallel>, #tpu.dimension_semantics<parallel>], iteration_bounds = array<i64: 2, 1>, scalar_prefetch = 0 : i64, scratch_operands = 0 : i64, tpu.core_type = #tpu.core_type<tc>, window_params = [{transform_indices = @transform_0, window_bounds = array<i64: 1, 128, 128>}, {pipeline_mode = #tpu.pipeline_mode<synchronous>, transform_indices = @transform_1, window_bounds = array<i64: 128, 384>}, {pipeline_mode = #tpu.pipeline_mode<synchronous>, transform_indices = @transform_2, window_bounds = array<i64: 1, 384>}, {transform_indices = @transform_3, window_bounds = array<i64: 1, 128, 128>}, {transform_indices = @transform_4, window_bounds = array<i64: 1, 128, 128>}, {transform_indices = @transform_5, window_bounds = array<i64: 1, 128, 128>}]} {
    %c0 = arith.constant 0 : index
    %c0_0 = arith.constant 0 : index
    %c0_1 = arith.constant 0 : index
    %0 = vector.load %arg2[%c0, %c0_0, %c0_1] : memref<1x128x128xbf16, #tpu.memory_space<vmem>>, vector<1x128x128xbf16>
    %1 = vector.shape_cast %0 : vector<1x128x128xbf16> to vector<128x128xbf16>
    %c0_2 = arith.constant 0 : index
    %c0_3 = arith.constant 0 : index
    %2 = vector.load %arg3[%c0_2, %c0_3] : memref<128x384xbf16, #tpu.memory_space<vmem>>, vector<128x384xbf16>
    %cst = arith.constant dense<0.000000e+00> : vector<128x384xf32>
    %3 = tpu.matmul %1, %2, %cst {dimension_numbers = #tpu.dot_dimension_numbers<[1], [0], [0], [1], [0, 0, 1, 1], [], []>} : vector<128x128xbf16>, vector<128x384xbf16>, vector<128x384xf32> -> vector<128x384xf32>
    %c0_4 = arith.constant 0 : index
    %c0_5 = arith.constant 0 : index
    %4 = vector.load %arg4[%c0_4, %c0_5] : memref<1x384xf32, #tpu.memory_space<vmem>>, vector<1x384xf32>
    %5 = vector.broadcast %4 : vector<1x384xf32> to vector<128x384xf32>
    %6 = arith.addf %3, %5 : vector<128x384xf32>
    %cst_6 = arith.constant 0.000000e+00 : f32
    %7 = vector.broadcast %cst_6 : f32 to vector<128x384xf32>
    %8 = arith.maximumf %6, %7 : vector<128x384xf32>
    %9 = vector.extract_strided_slice %8 {offsets = [0, 0], sizes = [128, 128], strides = [1, 1]} : vector<128x384xf32> to vector<128x128xf32>
    %10 = arith.truncf %9 : vector<128x128xf32> to vector<128x128xbf16>
    %c0_7 = arith.constant 0 : index
    %c0_8 = arith.constant 0 : index
    %c0_9 = arith.constant 0 : index
    %11 = vector.load %arg5[%c0_7, %c0_8, %c0_9] : memref<1x128x128xbf16, #tpu.memory_space<vmem>>, vector<1x128x128xbf16>
    %12 = vector.shape_cast %11 : vector<1x128x128xbf16> to vector<128x128xbf16>
    %13 = vector.shape_cast %10 : vector<128x128xbf16> to vector<1x128x128xbf16>
    tpu.vector_store %arg5[%c0_7, %c0_8, %c0_9], %13 {strides = array<i32>} : memref<1x128x128xbf16, #tpu.memory_space<vmem>>, vector<1x128x128xbf16>,
    %14 = vector.extract_strided_slice %8 {offsets = [0, 128], sizes = [128, 128], strides = [1, 1]} : vector<128x384xf32> to vector<128x128xf32>
    %15 = arith.truncf %14 : vector<128x128xf32> to vector<128x128xbf16>
    %c0_10 = arith.constant 0 : index
    %c0_11 = arith.constant 0 : index
    %c0_12 = arith.constant 0 : index
    %16 = vector.load %arg6[%c0_10, %c0_11, %c0_12] : memref<1x128x128xbf16, #tpu.memory_space<vmem>>, vector<1x128x128xbf16>
    %17 = vector.shape_cast %16 : vector<1x128x128xbf16> to vector<128x128xbf16>
    %18 = vector.shape_cast %15 : vector<128x128xbf16> to vector<1x128x128xbf16>
    tpu.vector_store %arg6[%c0_10, %c0_11, %c0_12], %18 {strides = array<i32>} : memref<1x128x128xbf16, #tpu.memory_space<vmem>>, vector<1x128x128xbf16>,
    %19 = vector.extract_strided_slice %8 {offsets = [0, 256], sizes = [128, 128], strides = [1, 1]} : vector<128x384xf32> to vector<128x128xf32>
    %20 = arith.truncf %19 : vector<128x128xf32> to vector<128x128xbf16>
    %c0_13 = arith.constant 0 : index
    %c0_14 = arith.constant 0 : index
    %c0_15 = arith.constant 0 : index
    %21 = vector.load %arg7[%c0_13, %c0_14, %c0_15] : memref<1x128x128xbf16, #tpu.memory_space<vmem>>, vector<1x128x128xbf16>
    %22 = vector.shape_cast %21 : vector<1x128x128xbf16> to vector<128x128xbf16>
    %23 = vector.shape_cast %20 : vector<128x128xbf16> to vector<1x128x128xbf16>
    tpu.vector_store %arg7[%c0_13, %c0_14, %c0_15], %23 {strides = array<i32>} : memref<1x128x128xbf16, #tpu.memory_space<vmem>>, vector<1x128x128xbf16>,
    return
  }
  func.func @transform_0(%arg0: i32, %arg1: i32) -> (i32, i32, i32) {
    %c0_i32 = arith.constant 0 : i32
    %c0_i32_0 = arith.constant 0 : i32
    return %arg0, %arg1, %c0_i32 : i32, i32, i32
  }
  func.func @transform_1(%arg0: i32, %arg1: i32) -> (i32, i32) {
    %c0_i32 = arith.constant 0 : i32
    %c0_i32_0 = arith.constant 0 : i32
    %c0_i32_1 = arith.constant 0 : i32
    return %c0_i32, %c0_i32_0 : i32, i32
  }
  func.func @transform_2(%arg0: i32, %arg1: i32) -> (i32, i32) {
    %c0_i32 = arith.constant 0 : i32
    %c0_i32_0 = arith.constant 0 : i32
    %c0_i32_1 = arith.constant 0 : i32
    return %c0_i32, %c0_i32_0 : i32, i32
  }
  func.func @transform_3(%arg0: i32, %arg1: i32) -> (i32, i32, i32) {
    %c0_i32 = arith.constant 0 : i32
    %c0_i32_0 = arith.constant 0 : i32
    return %arg0, %arg1, %c0_i32 : i32, i32, i32
  }
  func.func @transform_4(%arg0: i32, %arg1: i32) -> (i32, i32, i32) {
    %c0_i32 = arith.constant 0 : i32
    %c0_i32_0 = arith.constant 0 : i32
    return %arg0, %arg1, %c0_i32 : i32, i32, i32
  }
  func.func @transform_5(%arg0: i32, %arg1: i32) -> (i32, i32, i32) {
    %c0_i32 = arith.constant 0 : i32
    %c0_i32_0 = arith.constant 0 : i32
    return %arg0, %arg1, %c0_i32 : i32, i32, i32
  }
}

</mosaic_0001>

<llo_original>
// kernel: tpu_custom_call.1
$region0: #{tpu_custom_call.1}
  #allocation0 [shape = 'u32[]', space=smem, size = 0x4, offset = 0x4, fixed_abs, tag = 'smem constant byte address 0x4 - core index']
  #allocation1 [shape = 'u32[72,128]{1,0:T(1,128)}', space=vmem, size = 0x9000, scoped, tag = 'internal scratch']
  %s0 = inlined_call_operand.hbm [shape: bf16[2,128,128], index: 0, kind: input, shape index: {}]
  %s1 = inlined_call_operand.hbm [shape: bf16[128,384], index: 1, kind: input, shape index: {}]
  %s2 = inlined_call_operand.hbm [shape: f32[1,384], index: 2, kind: input, shape index: {}]
  %s3 = inlined_call_operand.hbm [shape: bf16[2,128,128], index: 3, kind: output, shape index: {0}]
  %s4 = inlined_call_operand.hbm [shape: bf16[2,128,128], index: 4, kind: output, shape index: {1}]
  %s5 = inlined_call_operand.hbm [shape: bf16[2,128,128], index: 5, kind: output, shape index: {2}]
  %6 = xla_tuple %s3, %s4, %s5
  %s7 = sld [smem:[#allocation0]]
  $region73: #{tpu_custom_call.1} parent=0
    _
  %s9 = ssub.s32 1, %s7
  %s10 = scalar_select 0, %s9, %s7
  $region1: #{tpu_custom_call.1} parent=0
    #allocation2 [shape = 'u8[65536]{0}', space=vmem, size = 0x10000, scoped, tag = 'input window, operand 0']
    #allocation3 [shape = 's32[2]{0}', space=sflag, size = 0x8, scoped, tag = 'scoped memory for tpu_custom_call.1']
    #allocation4 [shape = 's32[2]{0}', space=sflag, size = 0x8, scoped, tag = 'scoped memory for tpu_custom_call.1']
    #allocation5 [shape = 'u8[98304]{0}', space=vmem, size = 0x18000, scoped, tag = 'input window, operand 1, single buffered']
    #allocation6 [shape = 's32[1]{0}', space=sflag, size = 0x4, scoped, tag = 'scoped memory for tpu_custom_call.1']
    #allocation7 [shape = 'u8[1536]{0}', space=vmem, size = 0x800, scoped, tag = 'input window, operand 2, single buffered']
    #allocation8 [shape = 'u8[65536]{0}', space=vmem, size = 0x10000, scoped, tag = 'output window, operand 0']
    #allocation9 [shape = 'u8[65536]{0}', space=vmem, size = 0x10000, scoped, tag = 'output window, operand 1']
    #allocation10 [shape = 's32[2]{0}', space=sflag, size = 0x8, scoped, tag = 'scoped memory for tpu_custom_call.1']
    #allocation11 [shape = 'u8[65536]{0}', space=vmem, size = 0x10000, scoped, tag = 'output window, operand 2']
    %11 = vsyncpa [#allocation3], 0
    %s12 = scalar_lea.sflag [#allocation3], 1
    %13 = vsyncpa %s12, 0
    %14 = vsyncpa [#allocation6], 0
    %15 = vsyncpa [#allocation4], 0
    %s16 = scalar_lea.sflag [#allocation4], 1
    %17 = vsyncpa %s16, 0
    %18 = vsyncpa [#allocation10], 0
    %s19 = scalar_lea.sflag [#allocation10], 1
    %20 = vsyncpa %s19, 0
    loop: start=0, step=1, limit=4
    $region2: #{tpu_custom_call.1} parent=1 // loop_pre_header
      _
    $region3: #{tpu_custom_call.1} parent=1 // loop_header
      %s22 = sphi 0, %s26
      %p23 = scmp.ge.s32.totalorder %s22, 4
      %s29 = sphi 0, %s41
      %s30 = sphi 0, %s37
      %s31 = sphi 0, %s29
      %s32 = sphi 0, %s30
      %s33 = sphi 0, %s31
      %s34 = sphi 0, %s32
      %s46 = sphi 0, %s48
      %s49 = sphi 0, %s46
      %s50 = sphi 0, %s49
      %s66 = sphi 0, %s50
      %s70 = sphi 0, %s70
      %s72 = sphi 0, %s70
      %s73 = sphi 0, %s72
      %s87 = sphi 0, %s73
      %s91 = sphi 0, %s91
      %s93 = sphi 0, %s91
      %s94 = sphi 0, %s93
      %s108 = sphi 0, %s94
      %s116 = sphi 0, %s118
      %s119 = sphi 0, %s116
      %s120 = sphi 0, %s119
      %s136 = sphi 0, %s120
      %s144 = sphi 0, %s146
      %s147 = sphi 0, %s144
      %s148 = sphi 0, %s147
      %s164 = sphi 0, %s148
      %s172 = sphi 0, %s174
      %s175 = sphi 0, %s172
      %s176 = sphi 0, %s175
      %s192 = sphi 0, %s176
    $region4: #{tpu_custom_call.1} parent=1 // loop_header_branch
      %25 = sbr.rel (%p23) target = $region8
    $region5: #{tpu_custom_call.1} parent=1 // loop_body
      %s27 = ssub.s32 %s22, 1
      %s28 = ssub.s32 %s22, 2
      %s35 = sadd.s32 1, %s30
      %p36 = scmp.ge.s32.totalorder %s35, 1
      %s37 = scalar_select %p36, 0, %s35
      %s38 = sadd.s32 1, %s29
      %s39 = scalar_select %p36, %s38, %s29
      %p40 = scmp.ge.s32.totalorder %s39, 2
      %s41 = scalar_select %p40, 0, %s39
      %s42 = ssub.s32 %s29, %s41
      %s43 = ssub.s32 %s30, %s37
      %s44 = sor.u32 %s42, %s43
      %p45 = scmp.eq.s32.totalorder %s44, 0
      %s47 = sadd.s32 %s46, 1
      %s48 = scalar_select %p45, %s46, %s47
      %p51 = pneg %p45
      %p52 = scmp.eq.s32.totalorder %s22, 1
      %p53 = por %p51, %p52
      %p54 = scmp.ne.s32.totalorder %s46, %s49
      %p55 = scmp.eq.s32.totalorder %s22, 0
      %p56 = por %p54, %p55
      %p57 = scmp.ne.s32.totalorder %s46, %s49
      %p58 = scmp.eq.s32.totalorder %s27, 1
      %p59 = por %p57, %p58
      %p60 = scmp.ne.s32.totalorder %s49, %s50
      %p61 = scmp.eq.s32.totalorder %s27, 0
      %p62 = por %p60, %p61
      %p63 = scmp.ne.s32.totalorder %s49, %s50
      %p64 = scmp.eq.s32.totalorder %s28, 1
      %p65 = por %p63, %p64
      %p67 = scmp.ne.s32.totalorder %s50, %s66
      %p68 = scmp.eq.s32.totalorder %s28, 0
      %p69 = por %p67, %p68
      %s71 = sadd.s32 %s70, 1
      %p74 = scmp.eq.s32.totalorder %s22, 1
      %p75 = scmp.ne.s32.totalorder %s70, %s72
      %p76 = scmp.eq.s32.totalorder %s22, 0
      %p77 = por %p75, %p76
      %p78 = scmp.ne.s32.totalorder %s70, %s72
      %p79 = scmp.eq.s32.totalorder %s27, 1
      %p80 = por %p78, %p79
      %p81 = scmp.ne.s32.totalorder %s72, %s73
      %p82 = scmp.eq.s32.totalorder %s27, 0
      %p83 = por %p81, %p82
      %p84 = scmp.ne.s32.totalorder %s72, %s73
      %p85 = scmp.eq.s32.totalorder %s28, 1
      %p86 = por %p84, %p85
      %p88 = scmp.ne.s32.totalorder %s73, %s87
      %p89 = scmp.eq.s32.totalorder %s28, 0
      %p90 = por %p88, %p89
      %s92 = sadd.s32 %s91, 1
      %p95 = scmp.eq.s32.totalorder %s22, 1
      %p96 = scmp.ne.s32.totalorder %s91, %s93
      %p97 = scmp.eq.s32.totalorder %s22, 0
      %p98 = por %p96, %p97
      %p99 = scmp.ne.s32.totalorder %s91, %s93
      %p100 = scmp.eq.s32.totalorder %s27, 1
      %p101 = por %p99, %p100
      %p102 = scmp.ne.s32.totalorder %s93, %s94
      %p103 = scmp.eq.s32.totalorder %s27, 0
      %p104 = por %p102, %p103
      %p105 = scmp.ne.s32.totalorder %s93, %s94
      %p106 = scmp.eq.s32.totalorder %s28, 1
      %p107 = por %p105, %p106
      %p109 = scmp.ne.s32.totalorder %s94, %s108
      %p110 = scmp.eq.s32.totalorder %s28, 0
      %p111 = por %p109, %p110
      %s112 = ssub.s32 %s29, %s41
      %s113 = ssub.s32 %s30, %s37
      %s114 = sor.u32 %s112, %s113
      %p115 = scmp.eq.s32.totalorder %s114, 0
      %s117 = sadd.s32 %s116, 1
      %s118 = scalar_select %p115, %s116, %s117
      %p121 = pneg %p115
      %p122 = scmp.eq.s32.totalorder %s22, 1
      %p123 = por %p121, %p122
      %p124 = scmp.ne.s32.totalorder %s116, %s119
      %p125 = scmp.eq.s32.totalorder %s22, 0
      %p126 = por %p124, %p125
      %p127 = scmp.ne.s32.totalorder %s116, %s119
      %p128 = scmp.eq.s32.totalorder %s27, 1
      %p129 = por %p127, %p128
      %p130 = scmp.ne.s32.totalorder %s119, %s120
      %p131 = scmp.eq.s32.totalorder %s27, 0
      %p132 = por %p130, %p131
      %p133 = scmp.ne.s32.totalorder %s119, %s120
      %p134 = scmp.eq.s32.totalorder %s28, 1
      %p135 = por %p133, %p134
      %p137 = scmp.ne.s32.totalorder %s120, %s136
      %p138 = scmp.eq.s32.totalorder %s28, 0
      %p139 = por %p137, %p138
      %s140 = ssub.s32 %s29, %s41
      %s141 = ssub.s32 %s30, %s37
      %s142 = sor.u32 %s140, %s141
      %p143 = scmp.eq.s32.totalorder %s142, 0
      %s145 = sadd.s32 %s144, 1
      %s146 = scalar_select %p143, %s144, %s145
      %p149 = pneg %p143
      %p150 = scmp.eq.s32.totalorder %s22, 1
      %p151 = por %p149, %p150
      %p152 = scmp.ne.s32.totalorder %s144, %s147
      %p153 = scmp.eq.s32.totalorder %s22, 0
      %p154 = por %p152, %p153
      %p155 = scmp.ne.s32.totalorder %s144, %s147
      %p156 = scmp.eq.s32.totalorder %s27, 1
      %p157 = por %p155, %p156
      %p158 = scmp.ne.s32.totalorder %s147, %s148
      %p159 = scmp.eq.s32.totalorder %s27, 0
      %p160 = por %p158, %p159
      %p161 = scmp.ne.s32.totalorder %s147, %s148
      %p162 = scmp.eq.s32.totalorder %s28, 1
      %p163 = por %p161, %p162
      %p165 = scmp.ne.s32.totalorder %s148, %s164
      %p166 = scmp.eq.s32.totalorder %s28, 0
      %p167 = por %p165, %p166
      %s168 = ssub.s32 %s29, %s41
      %s169 = ssub.s32 %s30, %s37
      %s170 = sor.u32 %s168, %s169
      %p171 = scmp.eq.s32.totalorder %s170, 0
      %s173 = sadd.s32 %s172, 1
      %s174 = scalar_select %p171, %s172, %s173
      %p177 = pneg %p171
      %p178 = scmp.eq.s32.totalorder %s22, 1
      %p179 = por %p177, %p178
      %p180 = scmp.ne.s32.totalorder %s172, %s175
      %p181 = scmp.eq.s32.totalorder %s22, 0
      %p182 = por %p180, %p181
      %p183 = scmp.ne.s32.totalorder %s172, %s175
      %p184 = scmp.eq.s32.totalorder %s27, 1
      %p185 = por %p183, %p184
      %p186 = scmp.ne.s32.totalorder %s175, %s176
      %p187 = scmp.eq.s32.totalorder %s27, 0
      %p188 = por %p186, %p187
      %p189 = scmp.ne.s32.totalorder %s175, %s176
      %p190 = scmp.eq.s32.totalorder %s28, 1
      %p191 = por %p189, %p190
      %p193 = scmp.ne.s32.totalorder %s176, %s192
      %p194 = scmp.eq.s32.totalorder %s28, 0
      %p195 = por %p193, %p194
      %p196 = scmp.le.s32.totalorder 1, %s22
      %p197 = scmp.lt.s32.totalorder %s22, 3
      %p198 = pnand %p196, %p197
      %p199 = pneg %p198
      // Predicated region
      $region9: #{tpu_custom_call.1} parent=5 // pred_check
        _
      $region10: #{tpu_custom_call.1} parent=5 // pred_check_branch
        %201 = sbr.rel (%p198) target = $region12
      $region11: #{tpu_custom_call.1} parent=5 // pred_region
        %s202 = ssub.s32 %s22, 1
        // Predicated region
        $region13: #{tpu_custom_call.1} parent=11 // pred_check
          %p203 = pneg %p83
        $region14: #{tpu_custom_call.1} parent=11 // pred_check_branch
          %205 = sbr.rel (%p203) target = $region16
        $region15: #{tpu_custom_call.1} parent=11 // pred_region
          %207 = vsyncadd [#allocation6], 0
          %s208 = sshll.u32 %s1, 4
          %s209 = int_to_ptr.hbm [resolvable:$true] %s208
          %s210 = sshll.u32 [#allocation5], 4
          %s211 = int_to_ptr.vmem [resolvable:$true] %s210
          %216 = dma.hbm_to_vmem [thread:$0]  %s209, 3072, %s211, [#allocation6], 192, 192, 12
        $region16: #{tpu_custom_call.1} parent=11 // pred_fallthru
          _
        // Predicated region
        $region17: #{tpu_custom_call.1} parent=11 // pred_check
          %p217 = pneg %p104
        $region18: #{tpu_custom_call.1} parent=11 // pred_check_branch
          %219 = sbr.rel (%p217) target = $region20
        $region19: #{tpu_custom_call.1} parent=11 // pred_region
          %221 = vsyncadd [#allocation6], 0
          %s223 = sshll.u32 %s2, 4
          %s224 = int_to_ptr.hbm [resolvable:$true] %s223
          %s225 = sshll.u32 [#allocation7], 4
          %s226 = int_to_ptr.vmem [resolvable:$true] %s225
          %228 = dma.hbm_to_vmem [thread:$0]  %s224, 48, %s226, [#allocation6]
        $region20: #{tpu_custom_call.1} parent=11 // pred_fallthru
          _
      $region12: #{tpu_custom_call.1} parent=5 // pred_fallthru
        _
      %p229 = scmp.lt.s32.totalorder %s22, 2
      // Predicated region
      $region21: #{tpu_custom_call.1} parent=5 // pred_check
        %p230 = pneg %p229
      $region22: #{tpu_custom_call.1} parent=5 // pred_check_branch
        %232 = sbr.rel (%p230) target = $region24
      $region23: #{tpu_custom_call.1} parent=5 // pred_region
        // Predicated region
        $region25: #{tpu_custom_call.1} parent=23 // pred_check
          %p233 = pneg %p56
        $region26: #{tpu_custom_call.1} parent=23 // pred_check_branch
          %235 = sbr.rel (%p233) target = $region28
        $region27: #{tpu_custom_call.1} parent=23 // pred_region
          %s236 = sand.u32 %s46, 1
          %s237 = scalar_lea.sflag [#allocation3], %s236
          %s238 = sand.u32 %s46, 1
          %s239 = smul.addr %s238, 64
          %s240 = scalar_lea.vmem [#allocation2], %s239
          %s241 = smul.u32 16, %s30
          %243 = vsyncadd %s237, 0
          %s244 = smul.addr %s29, 16
          %s245 = sadd.s32 %s241, %s244
          %s246 = smul.addr %s245, 4
          %s247 = scalar_lea.hbm %s0, %s246
          %s248 = sshll.u32 %s247, 4
          %s249 = int_to_ptr.hbm [resolvable:$true] %s248
          %s250 = sshll.u32 %s240, 4
          %s251 = int_to_ptr.vmem [resolvable:$true] %s250
          %256 = dma.hbm_to_vmem [thread:$0]  %s249, 1024, %s251, %s237, 64, 64, 4
        $region28: #{tpu_custom_call.1} parent=23 // pred_fallthru
          _
      $region24: #{tpu_custom_call.1} parent=5 // pred_fallthru
        _
      %p257 = scmp.le.s32.totalorder 1, %s22
      %p258 = scmp.lt.s32.totalorder %s22, 3
      %p259 = pnand %p257, %p258
      %p260 = pneg %p259
      // Predicated region
      $region29: #{tpu_custom_call.1} parent=5 // pred_check
        _
      $region30: #{tpu_custom_call.1} parent=5 // pred_check_branch
        %262 = sbr.rel (%p259) target = $region32
      $region31: #{tpu_custom_call.1} parent=5 // pred_region
        %s263 = ssub.s32 %s22, 1
        %s264 = sand.u32 %s49, 1
        %s265 = scalar_lea.sflag [#allocation3], %s264
        %s266 = sand.u32 %s49, 1
        %s267 = smul.addr %s266, 64
        %s268 = scalar_lea.vmem [#allocation2], %s267
        // Predicated region
        $region33: #{tpu_custom_call.1} parent=31 // pred_check
          %p269 = pneg %p62
        $region34: #{tpu_custom_call.1} parent=31 // pred_check_branch
          %271 = sbr.rel (%p269) target = $region36
        $region35: #{tpu_custom_call.1} parent=31 // pred_region
          %273 = dma.done %s265, 1024
        $region36: #{tpu_custom_call.1} parent=31 // pred_fallthru
          _
        // Predicated region
        $region37: #{tpu_custom_call.1} parent=31 // pred_check
          %p274 = pneg %p83
        $region38: #{tpu_custom_call.1} parent=31 // pred_check_branch
          %276 = sbr.rel (%p274) target = $region40
        $region39: #{tpu_custom_call.1} parent=31 // pred_region
          %278 = dma.done [#allocation6], 3072
        $region40: #{tpu_custom_call.1} parent=31 // pred_fallthru
          _
        // Predicated region
        $region41: #{tpu_custom_call.1} parent=31 // pred_check
          %p279 = pneg %p104
        $region42: #{tpu_custom_call.1} parent=31 // pred_check_branch
          %281 = sbr.rel (%p279) target = $region44
        $region43: #{tpu_custom_call.1} parent=31 // pred_region
          %283 = dma.done [#allocation6], 48
        $region44: #{tpu_custom_call.1} parent=31 // pred_fallthru
          _
        %s284 = sand.u32 %s49, 1
        %s285 = scalar_lea.sflag [#allocation3], %s284
        %s286 = sand.u32 %s49, 1
        %s287 = smul.addr %s286, 64
        %s288 = scalar_lea.vmem [#allocation2], %s287
        %p289 = pneg %p62
        %p290 = pneg %p59
        %p291 = pneg %p83
        %p292 = pneg %p80
        %p293 = pneg %p104
        %p294 = pneg %p101
        %p295 = pneg %p132
        %p296 = pneg %p129
        %s297 = sand.u32 %s119, 1
        %s298 = scalar_lea.sflag [#allocation4], %s297
        %s299 = sand.u32 %s119, 1
        %s300 = smul.addr %s299, 64
        %s301 = scalar_lea.vmem [#allocation8], %s300
        %p302 = pneg %p160
        %p303 = pneg %p157
        %s304 = sand.u32 %s27, 1
        %s305 = scalar_lea.sflag [#allocation10], %s304
        %s306 = sand.u32 %s147, 1
        %s307 = smul.addr %s306, 64
        %s308 = scalar_lea.vmem [#allocation9], %s307
        %p309 = pneg %p188
        %p310 = pneg %p185
        %s311 = sand.u32 %s27, 1
        %s312 = scalar_lea.sflag [#allocation10], %s311
        %s313 = sand.u32 %s175, 1
        %s314 = smul.addr %s313, 64
        %s315 = scalar_lea.vmem [#allocation11], %s314
        %s316 = smul.u32 16, %s32
        %s317 = smul.u32 16, %s32
        %s318 = smul.u32 16, %s32
        %s319 = smul.u32 16, %s32
        %v320 = vld [vmem:[%s268] sm:$0xf]
        %v321 = vld [vmem:[%s268 + $0x4] sm:$0xf]
        %v322 = vld [vmem:[%s268 + $0x8] sm:$0xf]
        %v323 = vld [vmem:[%s268 + $0xc] sm:$0xf]
        %v324 = vld [vmem:[%s268 + $0x10] sm:$0xf]
        %v325 = vld [vmem:[%s268 + $0x14] sm:$0xf]
        %v326 = vld [vmem:[%s268 + $0x18] sm:$0xf]
        %v327 = vld [vmem:[%s268 + $0x1c] sm:$0xf]
        %v328 = vld [vmem:[%s268 + $0x20] sm:$0xf]
        %v329 = vld [vmem:[%s268 + $0x24] sm:$0xf]
        %v330 = vld [vmem:[%s268 + $0x28] sm:$0xf]
        %v331 = vld [vmem:[%s268 + $0x2c] sm:$0xf]
        %v332 = vld [vmem:[%s268 + $0x30] sm:$0xf]
        %v333 = vld [vmem:[%s268 + $0x34] sm:$0xf]
        %v334 = vld [vmem:[%s268 + $0x38] sm:$0xf]
        %v335 = vld [vmem:[%s268 + $0x3c] sm:$0xf]
        %v336 = vld [vmem:[#allocation5] sm:$0xff]
        %v337 = vld [vmem:[#allocation5 + $0x8] sm:$0xf]
        %v338 = vld [vmem:[#allocation5 + $0xc] sm:$0xff]
        %v339 = vld [vmem:[#allocation5 + $0x14] sm:$0xf]
        %v340 = vld [vmem:[#allocation5 + $0x18] sm:$0xff]
        %v341 = vld [vmem:[#allocation5 + $0x20] sm:$0xf]
        %v342 = vld [vmem:[#allocation5 + $0x24] sm:$0xff]
        %v343 = vld [vmem:[#allocation5 + $0x2c] sm:$0xf]
        %v344 = vld [vmem:[#allocation5 + $0x30] sm:$0xff]
        %v345 = vld [vmem:[#allocation5 + $0x38] sm:$0xf]
        %v346 = vld [vmem:[#allocation5 + $0x3c] sm:$0xff]
        %v347 = vld [vmem:[#allocation5 + $0x44] sm:$0xf]
        %v348 = vld [vmem:[#allocation5 + $0x48] sm:$0xff]
        %v349 = vld [vmem:[#allocation5 + $0x50] sm:$0xf]
        %v350 = vld [vmem:[#allocation5 + $0x54] sm:$0xff]
        %v351 = vld [vmem:[#allocation5 + $0x5c] sm:$0xf]
        %v352 = vld [vmem:[#allocation5 + $0x60] sm:$0xff]
        %v353 = vld [vmem:[#allocation5 + $0x68] sm:$0xf]
        %v354 = vld [vmem:[#allocation5 + $0x6c] sm:$0xff]
        %v355 = vld [vmem:[#allocation5 + $0x74] sm:$0xf]
        %v356 = vld [vmem:[#allocation5 + $0x78] sm:$0xff]
        %v357 = vld [vmem:[#allocation5 + $0x80] sm:$0xf]
        %v358 = vld [vmem:[#allocation5 + $0x84] sm:$0xff]
        %v359 = vld [vmem:[#allocation5 + $0x8c] sm:$0xf]
        %v360 = vld [vmem:[#allocation5 + $0x90] sm:$0xff]
        %v361 = vld [vmem:[#allocation5 + $0x98] sm:$0xf]
        %v362 = vld [vmem:[#allocation5 + $0x9c] sm:$0xff]
        %v363 = vld [vmem:[#allocation5 + $0xa4] sm:$0xf]
        %v364 = vld [vmem:[#allocation5 + $0xa8] sm:$0xff]
        %v365 = vld [vmem:[#allocation5 + $0xb0] sm:$0xf]
        %v366 = vld [vmem:[#allocation5 + $0xb4] sm:$0xff]
        %v367 = vld [vmem:[#allocation5 + $0xbc] sm:$0xf]
        %v368 = vld [vmem:[#allocation7] sm:$0x7]
        %v370 = vperm.slane %v368, 0
        %v371 = vperm.slane %v368, 1
        %v372 = vperm.slane %v368, 2
        %v392 = vunpack.c.l.b16 %v320
        %v393 = vunpack.c.l.b16 %v321
        %v394 = vunpack.c.l.b16 %v322
        %v395 = vunpack.c.l.b16 %v323
        %v396 = vunpack.c.l.b16 %v324
        %v397 = vunpack.c.l.b16 %v325
        %v398 = vunpack.c.l.b16 %v326
        %v399 = vunpack.c.l.b16 %v327
        %v400 = vunpack.c.l.b16 %v328
        %v401 = vunpack.c.l.b16 %v329
        %v402 = vunpack.c.l.b16 %v330
        %v403 = vunpack.c.l.b16 %v331
        %v404 = vunpack.c.l.b16 %v332
        %v405 = vunpack.c.l.b16 %v333
        %v406 = vunpack.c.l.b16 %v334
        %v407 = vunpack.c.l.b16 %v335
        %v408 = vpack.c.b16 %v393, %v392
        %v409 = vpack.c.b16 %v395, %v394
        %v410 = vpack.c.b16 %v397, %v396
        %v411 = vpack.c.b16 %v399, %v398
        %v412 = vpack.c.b16 %v401, %v400
        %v413 = vpack.c.b16 %v403, %v402
        %v414 = vpack.c.b16 %v405, %v404
        %v415 = vpack.c.b16 %v407, %v406
        %v456 = vunpack.c.l.b16 %v336
        %v457 = vunpack.c.h.b16 %v336
        %v458 = vunpack.c.l.b16 %v337
        %v459 = vunpack.c.l.b16 %v338
        %v460 = vunpack.c.h.b16 %v338
        %v461 = vunpack.c.l.b16 %v339
        %v462 = vunpack.c.l.b16 %v340
        %v463 = vunpack.c.h.b16 %v340
        %v464 = vunpack.c.l.b16 %v341
        %v465 = vunpack.c.l.b16 %v342
        %v466 = vunpack.c.h.b16 %v342
        %v467 = vunpack.c.l.b16 %v343
        %v468 = vunpack.c.l.b16 %v344
        %v469 = vunpack.c.h.b16 %v344
        %v470 = vunpack.c.l.b16 %v345
        %v471 = vunpack.c.l.b16 %v346
        %v472 = vunpack.c.h.b16 %v346
        %v473 = vunpack.c.l.b16 %v347
        %v474 = vunpack.c.l.b16 %v348
        %v475 = vunpack.c.h.b16 %v348
        %v476 = vunpack.c.l.b16 %v349
        %v477 = vunpack.c.l.b16 %v350
        %v478 = vunpack.c.h.b16 %v350
        %v479 = vunpack.c.l.b16 %v351
        %v480 = vunpack.c.l.b16 %v352
        %v481 = vunpack.c.h.b16 %v352
        %v482 = vunpack.c.l.b16 %v353
        %v483 = vunpack.c.l.b16 %v354
        %v484 = vunpack.c.h.b16 %v354
        %v485 = vunpack.c.l.b16 %v355
        %v486 = vunpack.c.l.b16 %v356
        %v487 = vunpack.c.h.b16 %v356
        %v488 = vunpack.c.l.b16 %v357
        %v489 = vunpack.c.l.b16 %v358
        %v490 = vunpack.c.h.b16 %v358
        %v491 = vunpack.c.l.b16 %v359
        %v492 = vunpack.c.l.b16 %v360
        %v493 = vunpack.c.h.b16 %v360
        %v494 = vunpack.c.l.b16 %v361
        %v495 = vunpack.c.l.b16 %v362
        %v496 = vunpack.c.h.b16 %v362
        %v497 = vunpack.c.l.b16 %v363
        %v498 = vunpack.c.l.b16 %v364
        %v499 = vunpack.c.h.b16 %v364
        %v500 = vunpack.c.l.b16 %v365
        %v501 = vunpack.c.l.b16 %v366
        %v502 = vunpack.c.h.b16 %v366
        %v503 = vunpack.c.l.b16 %v367
        %v504 = vpack.c.b16 %v459, %v456
        %v505 = vpack.c.b16 %v460, %v457
        %v506 = vpack.c.b16 %v461, %v458
        %v507 = vpack.c.b16 %v465, %v462
        %v508 = vpack.c.b16 %v466, %v463
        %v509 = vpack.c.b16 %v467, %v464
        %v510 = vpack.c.b16 %v471, %v468
        %v511 = vpack.c.b16 %v472, %v469
        %v512 = vpack.c.b16 %v473, %v470
        %v513 = vpack.c.b16 %v477, %v474
        %v514 = vpack.c.b16 %v478, %v475
        %v515 = vpack.c.b16 %v479, %v476
        %v516 = vpack.c.b16 %v483, %v480
        %v517 = vpack.c.b16 %v484, %v481
        %v518 = vpack.c.b16 %v485, %v482
        %v519 = vpack.c.b16 %v489, %v486
        %v520 = vpack.c.b16 %v490, %v487
        %v521 = vpack.c.b16 %v491, %v488
        %v522 = vpack.c.b16 %v495, %v492
        %v523 = vpack.c.b16 %v496, %v493
        %v524 = vpack.c.b16 %v497, %v494
        %v525 = vpack.c.b16 %v501, %v498
        %v526 = vpack.c.b16 %v502, %v499
        %v527 = vpack.c.b16 %v503, %v500
        %552 = vmatpush.bf16.msra.mxu0 %v525
        %553 = vmatpush.bf16.msra.mxu0 %v522
        %554 = vmatpush.bf16.msra.mxu0 %v519
        %555 = vmatpush.bf16.msra.mxu0 %v516
        %556 = vmatpush.bf16.msra.mxu0 %v513
        %557 = vmatpush.bf16.msra.mxu0 %v510
        %558 = vmatpush.bf16.msra.mxu0 %v507
        %559 = vmatpush.bf16.msra.mxu0 %v504
        %560 = vmatmul.bf16.gmra.mxu0 %v408
        %v561 = vpop.f32.mrf.mxu0
        %v562 = vadd.f32 %v370, %v561
        %v563 = vpop.f32.mrf.mxu0
        %v564 = vadd.f32 %v370, %v563
        %565 = vmatmul.bf16.gmra.mxu0 %v409
        %v566 = vpop.f32.mrf.mxu0
        %v567 = vadd.f32 %v370, %v566
        %v568 = vpop.f32.mrf.mxu0
        %v569 = vadd.f32 %v370, %v568
        %570 = vmatmul.bf16.gmra.mxu0 %v410
        %v571 = vpop.f32.mrf.mxu0
        %v572 = vadd.f32 %v370, %v571
        %v573 = vpop.f32.mrf.mxu0
        %v574 = vadd.f32 %v370, %v573
        %575 = vmatmul.bf16.gmra.mxu0 %v411
        %v576 = vpop.f32.mrf.mxu0
        %v577 = vadd.f32 %v370, %v576
        %v578 = vpop.f32.mrf.mxu0
        %v579 = vadd.f32 %v370, %v578
        %580 = vmatmul.bf16.gmra.mxu0 %v412
        %v581 = vpop.f32.mrf.mxu0
        %v582 = vadd.f32 %v370, %v581
        %v583 = vpop.f32.mrf.mxu0
        %v584 = vadd.f32 %v370, %v583
        %585 = vmatmul.bf16.gmra.mxu0 %v413
        %v586 = vpop.f32.mrf.mxu0
        %v587 = vadd.f32 %v370, %v586
        %v588 = vpop.f32.mrf.mxu0
        %v589 = vadd.f32 %v370, %v588
        %590 = vmatmul.bf16.gmra.mxu0 %v414
        %v591 = vpop.f32.mrf.mxu0
        %v592 = vadd.f32 %v370, %v591
        %v593 = vpop.f32.mrf.mxu0
        %v594 = vadd.f32 %v370, %v593
        %595 = vmatmul.bf16.gmra.mxu0 %v415
        %v596 = vpop.f32.mrf.mxu0
        %v597 = vadd.f32 %v370, %v596
        %v598 = vpop.f32.mrf.mxu0
        %v599 = vadd.f32 %v370, %v598
        %600 = vdwg.mxu0
        %601 = vmatpush.bf16.msra.mxu0 %v526
        %602 = vmatpush.bf16.msra.mxu0 %v523
        %603 = vmatpush.bf16.msra.mxu0 %v520
        %604 = vmatpush.bf16.msra.mxu0 %v517
        %605 = vmatpush.bf16.msra.mxu0 %v514
        %606 = vmatpush.bf16.msra.mxu0 %v511
        %607 = vmatpush.bf16.msra.mxu0 %v508
        %608 = vmatpush.bf16.msra.mxu0 %v505
        %609 = vmatmul.bf16.gmra.mxu0 %v408
        %v610 = vpop.f32.mrf.mxu0
        %v611 = vadd.f32 %v371, %v610
        %v612 = vpop.f32.mrf.mxu0
        %v613 = vadd.f32 %v371, %v612
        %614 = vmatmul.bf16.gmra.mxu0 %v409
        %v615 = vpop.f32.mrf.mxu0
        %v616 = vadd.f32 %v371, %v615
        %v617 = vpop.f32.mrf.mxu0
        %v618 = vadd.f32 %v371, %v617
        %619 = vmatmul.bf16.gmra.mxu0 %v410
        %v620 = vpop.f32.mrf.mxu0
        %v621 = vadd.f32 %v371, %v620
        %v622 = vpop.f32.mrf.mxu0
        %v623 = vadd.f32 %v371, %v622
        %624 = vmatmul.bf16.gmra.mxu0 %v411
        %v625 = vpop.f32.mrf.mxu0
        %v626 = vadd.f32 %v371, %v625
        %v627 = vpop.f32.mrf.mxu0
        %v628 = vadd.f32 %v371, %v627
        %629 = vmatmul.bf16.gmra.mxu0 %v412
        %v630 = vpop.f32.mrf.mxu0
        %v631 = vadd.f32 %v371, %v630
        %v632 = vpop.f32.mrf.mxu0
        %v633 = vadd.f32 %v371, %v632
        %634 = vmatmul.bf16.gmra.mxu0 %v413
        %v635 = vpop.f32.mrf.mxu0
        %v636 = vadd.f32 %v371, %v635
        %v637 = vpop.f32.mrf.mxu0
        %v638 = vadd.f32 %v371, %v637
        %639 = vmatmul.bf16.gmra.mxu0 %v414
        %v640 = vpop.f32.mrf.mxu0
        %v641 = vadd.f32 %v371, %v640
        %v642 = vpop.f32.mrf.mxu0
        %v643 = vadd.f32 %v371, %v642
        %644 = vmatmul.bf16.gmra.mxu0 %v415
        %v645 = vpop.f32.mrf.mxu0
        %v646 = vadd.f32 %v371, %v645
        %v647 = vpop.f32.mrf.mxu0
        %v648 = vadd.f32 %v371, %v647
        %649 = vdwg.mxu0
        %650 = vmatpush.bf16.msra.mxu0 %v527
        %651 = vmatpush.bf16.msra.mxu0 %v524
        %652 = vmatpush.bf16.msra.mxu0 %v521
        %653 = vmatpush.bf16.msra.mxu0 %v518
        %654 = vmatpush.bf16.msra.mxu0 %v515
        %655 = vmatpush.bf16.msra.mxu0 %v512
        %656 = vmatpush.bf16.msra.mxu0 %v509
        %657 = vmatpush.bf16.msra.mxu0 %v506
        %658 = vmatmul.bf16.gmra.mxu0 %v408
        %v659 = vpop.f32.mrf.mxu0
        %v660 = vadd.f32 %v372, %v659
        %v661 = vpop.f32.mrf.mxu0
        %v662 = vadd.f32 %v372, %v661
        %663 = vmatmul.bf16.gmra.mxu0 %v409
        %v664 = vpop.f32.mrf.mxu0
        %v665 = vadd.f32 %v372, %v664
        %v666 = vpop.f32.mrf.mxu0
        %v667 = vadd.f32 %v372, %v666
        %668 = vmatmul.bf16.gmra.mxu0 %v410
        %v669 = vpop.f32.mrf.mxu0
        %v670 = vadd.f32 %v372, %v669
        %v671 = vpop.f32.mrf.mxu0
        %v672 = vadd.f32 %v372, %v671
        %673 = vmatmul.bf16.gmra.mxu0 %v411
        %v674 = vpop.f32.mrf.mxu0
        %v675 = vadd.f32 %v372, %v674
        %v676 = vpop.f32.mrf.mxu0
        %v677 = vadd.f32 %v372, %v676
        %678 = vmatmul.bf16.gmra.mxu0 %v412
        %v679 = vpop.f32.mrf.mxu0
        %v680 = vadd.f32 %v372, %v679
        %v681 = vpop.f32.mrf.mxu0
        %v682 = vadd.f32 %v372, %v681
        %683 = vmatmul.bf16.gmra.mxu0 %v413
        %v684 = vpop.f32.mrf.mxu0
        %v685 = vadd.f32 %v372, %v684
        %v686 = vpop.f32.mrf.mxu0
        %v687 = vadd.f32 %v372, %v686
        %688 = vmatmul.bf16.gmra.mxu0 %v414
        %v689 = vpop.f32.mrf.mxu0
        %v690 = vadd.f32 %v372, %v689
        %v691 = vpop.f32.mrf.mxu0
        %v692 = vadd.f32 %v372, %v691
        %693 = vmatmul.bf16.gmra.mxu0 %v415
        %v694 = vpop.f32.mrf.mxu0
        %v695 = vadd.f32 %v372, %v694
        %v696 = vpop.f32.mrf.mxu0
        %v697 = vadd.f32 %v372, %v696
        %698 = vdwg.mxu0
        %v699 = vmax.f32 %v562, 0.0
        %v700 = vmax.f32 %v611, 0.0
        %v701 = vmax.f32 %v660, 0.0
        %v702 = vmax.f32 %v564, 0.0
        %v703 = vmax.f32 %v613, 0.0
        %v704 = vmax.f32 %v662, 0.0
        %v705 = vmax.f32 %v567, 0.0
        %v706 = vmax.f32 %v616, 0.0
        %v707 = vmax.f32 %v665, 0.0
        %v708 = vmax.f32 %v569, 0.0
        %v709 = vmax.f32 %v618, 0.0
        %v710 = vmax.f32 %v667, 0.0
        %v711 = vmax.f32 %v572, 0.0
        %v712 = vmax.f32 %v621, 0.0
        %v713 = vmax.f32 %v670, 0.0
        %v714 = vmax.f32 %v574, 0.0
        %v715 = vmax.f32 %v623, 0.0
        %v716 = vmax.f32 %v672, 0.0
        %v717 = vmax.f32 %v577, 0.0
        %v718 = vmax.f32 %v626, 0.0
        %v719 = vmax.f32 %v675, 0.0
        %v720 = vmax.f32 %v579, 0.0
        %v721 = vmax.f32 %v628, 0.0
        %v722 = vmax.f32 %v677, 0.0
        %v723 = vmax.f32 %v582, 0.0
        %v724 = vmax.f32 %v631, 0.0
        %v725 = vmax.f32 %v680, 0.0
        %v726 = vmax.f32 %v584, 0.0
        %v727 = vmax.f32 %v633, 0.0
        %v728 = vmax.f32 %v682, 0.0
        %v729 = vmax.f32 %v587, 0.0
        %v730 = vmax.f32 %v636, 0.0
        %v731 = vmax.f32 %v685, 0.0
        %v732 = vmax.f32 %v589, 0.0
        %v733 = vmax.f32 %v638, 0.0
        %v734 = vmax.f32 %v687, 0.0
        %v735 = vmax.f32 %v592, 0.0
        %v736 = vmax.f32 %v641, 0.0
        %v737 = vmax.f32 %v690, 0.0
        %v738 = vmax.f32 %v594, 0.0
        %v739 = vmax.f32 %v643, 0.0
        %v740 = vmax.f32 %v692, 0.0
        %v741 = vmax.f32 %v597, 0.0
        %v742 = vmax.f32 %v646, 0.0
        %v743 = vmax.f32 %v695, 0.0
        %v744 = vmax.f32 %v599, 0.0
        %v745 = vmax.f32 %v648, 0.0
        %v746 = vmax.f32 %v697, 0.0
        %v747 = vpack.c.bf16 %v699, %v699
        %v748 = vpack.c.bf16 %v702, %v702
        %v749 = vpack.c.bf16 %v705, %v705
        %v750 = vpack.c.bf16 %v708, %v708
        %v751 = vpack.c.bf16 %v711, %v711
        %v752 = vpack.c.bf16 %v714, %v714
        %v753 = vpack.c.bf16 %v717, %v717
        %v754 = vpack.c.bf16 %v720, %v720
        %v755 = vpack.c.bf16 %v723, %v723
        %v756 = vpack.c.bf16 %v726, %v726
        %v757 = vpack.c.bf16 %v729, %v729
        %v758 = vpack.c.bf16 %v732, %v732
        %v759 = vpack.c.bf16 %v735, %v735
        %v760 = vpack.c.bf16 %v738, %v738
        %v761 = vpack.c.bf16 %v741, %v741
        %v762 = vpack.c.bf16 %v744, %v744
        %763 = vst [vmem:[%s301] sm:$0xf] %v747
        %764 = vst [vmem:[%s301 + $0x4] sm:$0xf] %v748
        %765 = vst [vmem:[%s301 + $0x8] sm:$0xf] %v749
        %766 = vst [vmem:[%s301 + $0xc] sm:$0xf] %v750
        %767 = vst [vmem:[%s301 + $0x10] sm:$0xf] %v751
        %768 = vst [vmem:[%s301 + $0x14] sm:$0xf] %v752
        %769 = vst [vmem:[%s301 + $0x18] sm:$0xf] %v753
        %770 = vst [vmem:[%s301 + $0x1c] sm:$0xf] %v754
        %771 = vst [vmem:[%s301 + $0x20] sm:$0xf] %v755
        %772 = vst [vmem:[%s301 + $0x24] sm:$0xf] %v756
        %773 = vst [vmem:[%s301 + $0x28] sm:$0xf] %v757
        %774 = vst [vmem:[%s301 + $0x2c] sm:$0xf] %v758
        %775 = vst [vmem:[%s301 + $0x30] sm:$0xf] %v759
        %776 = vst [vmem:[%s301 + $0x34] sm:$0xf] %v760
        %777 = vst [vmem:[%s301 + $0x38] sm:$0xf] %v761
        %778 = vst [vmem:[%s301 + $0x3c] sm:$0xf] %v762
        %v779 = vpack.c.bf16 %v700, %v700
        %v780 = vpack.c.bf16 %v703, %v703
        %v781 = vpack.c.bf16 %v706, %v706
        %v782 = vpack.c.bf16 %v709, %v709
        %v783 = vpack.c.bf16 %v712, %v712
        %v784 = vpack.c.bf16 %v715, %v715
        %v785 = vpack.c.bf16 %v718, %v718
        %v786 = vpack.c.bf16 %v721, %v721
        %v787 = vpack.c.bf16 %v724, %v724
        %v788 = vpack.c.bf16 %v727, %v727
        %v789 = vpack.c.bf16 %v730, %v730
        %v790 = vpack.c.bf16 %v733, %v733
        %v791 = vpack.c.bf16 %v736, %v736
        %v792 = vpack.c.bf16 %v739, %v739
        %v793 = vpack.c.bf16 %v742, %v742
        %v794 = vpack.c.bf16 %v745, %v745
        %795 = vst [vmem:[%s308] sm:$0xf] %v779
        %796 = vst [vmem:[%s308 + $0x4] sm:$0xf] %v780
        %797 = vst [vmem:[%s308 + $0x8] sm:$0xf] %v781
        %798 = vst [vmem:[%s308 + $0xc] sm:$0xf] %v782
        %799 = vst [vmem:[%s308 + $0x10] sm:$0xf] %v783
        %800 = vst [vmem:[%s308 + $0x14] sm:$0xf] %v784
        %801 = vst [vmem:[%s308 + $0x18] sm:$0xf] %v785
        %802 = vst [vmem:[%s308 + $0x1c] sm:$0xf] %v786
        %803 = vst [vmem:[%s308 + $0x20] sm:$0xf] %v787
        %804 = vst [vmem:[%s308 + $0x24] sm:$0xf] %v788
        %805 = vst [vmem:[%s308 + $0x28] sm:$0xf] %v789
        %806 = vst [vmem:[%s308 + $0x2c] sm:$0xf] %v790
        %807 = vst [vmem:[%s308 + $0x30] sm:$0xf] %v791
        %808 = vst [vmem:[%s308 + $0x34] sm:$0xf] %v792
        %809 = vst [vmem:[%s308 + $0x38] sm:$0xf] %v793
        %810 = vst [vmem:[%s308 + $0x3c] sm:$0xf] %v794
        %v811 = vpack.c.bf16 %v701, %v701
        %v812 = vpack.c.bf16 %v704, %v704
        %v813 = vpack.c.bf16 %v707, %v707
        %v814 = vpack.c.bf16 %v710, %v710
        %v815 = vpack.c.bf16 %v713, %v713
        %v816 = vpack.c.bf16 %v716, %v716
        %v817 = vpack.c.bf16 %v719, %v719
        %v818 = vpack.c.bf16 %v722, %v722
        %v819 = vpack.c.bf16 %v725, %v725
        %v820 = vpack.c.bf16 %v728, %v728
        %v821 = vpack.c.bf16 %v731, %v731
        %v822 = vpack.c.bf16 %v734, %v734
        %v823 = vpack.c.bf16 %v737, %v737
        %v824 = vpack.c.bf16 %v740, %v740
        %v825 = vpack.c.bf16 %v743, %v743
        %v826 = vpack.c.bf16 %v746, %v746
        %827 = vst [vmem:[%s315] sm:$0xf] %v811
        %828 = vst [vmem:[%s315 + $0x4] sm:$0xf] %v812
        %829 = vst [vmem:[%s315 + $0x8] sm:$0xf] %v813
        %830 = vst [vmem:[%s315 + $0xc] sm:$0xf] %v814
        %831 = vst [vmem:[%s315 + $0x10] sm:$0xf] %v815
        %832 = vst [vmem:[%s315 + $0x14] sm:$0xf] %v816
        %833 = vst [vmem:[%s315 + $0x18] sm:$0xf] %v817
        %834 = vst [vmem:[%s315 + $0x1c] sm:$0xf] %v818
        %835 = vst [vmem:[%s315 + $0x20] sm:$0xf] %v819
        %836 = vst [vmem:[%s315 + $0x24] sm:$0xf] %v820
        %837 = vst [vmem:[%s315 + $0x28] sm:$0xf] %v821
        %838 = vst [vmem:[%s315 + $0x2c] sm:$0xf] %v822
        %839 = vst [vmem:[%s315 + $0x30] sm:$0xf] %v823
        %840 = vst [vmem:[%s315 + $0x34] sm:$0xf] %v824
        %841 = vst [vmem:[%s315 + $0x38] sm:$0xf] %v825
        %842 = vst [vmem:[%s315 + $0x3c] sm:$0xf] %v826
        %s843 = sand.u32 %s119, 1
        %s844 = scalar_lea.sflag [#allocation4], %s843
        %s845 = sand.u32 %s119, 1
        %s846 = smul.addr %s845, 64
        %s847 = scalar_lea.vmem [#allocation8], %s846
        %s848 = sand.u32 %s27, 1
        %s849 = scalar_lea.sflag [#allocation10], %s848
        %s850 = sand.u32 %s147, 1
        %s851 = smul.addr %s850, 64
        %s852 = scalar_lea.vmem [#allocation9], %s851
        %s853 = sand.u32 %s27, 1
        %s854 = scalar_lea.sflag [#allocation10], %s853
        %s855 = sand.u32 %s175, 1
        %s856 = smul.addr %s855, 64
        %s857 = scalar_lea.vmem [#allocation11], %s856
        // Predicated region
        $region45: #{tpu_custom_call.1} parent=31 // pred_check
          %p858 = pneg %p129
        $region46: #{tpu_custom_call.1} parent=31 // pred_check_branch
          %860 = sbr.rel (%p858) target = $region48
        $region47: #{tpu_custom_call.1} parent=31 // pred_region
          %s861 = smul.u32 16, %s32
          %863 = vsyncadd %s844, 0
          %s864 = smul.addr %s31, 16
          %s865 = sadd.s32 %s861, %s864
          %s866 = smul.addr %s865, 4
          %s867 = scalar_lea.hbm %s3, %s866
          %s868 = sshll.u32 %s847, 4
          %s869 = int_to_ptr.vmem [resolvable:$true] %s868
          %s870 = sshll.u32 %s867, 4
          %s871 = int_to_ptr.hbm [resolvable:$true] %s870
          %876 = dma.vmem_to_hbm [thread:$0]  %s869, 1024, %s871, %s844, 64, 64, 4
        $region48: #{tpu_custom_call.1} parent=31 // pred_fallthru
          _
        // Predicated region
        $region49: #{tpu_custom_call.1} parent=31 // pred_check
          %p877 = pneg %p157
        $region50: #{tpu_custom_call.1} parent=31 // pred_check_branch
          %879 = sbr.rel (%p877) target = $region52
        $region51: #{tpu_custom_call.1} parent=31 // pred_region
          %s880 = smul.u32 16, %s32
          %882 = vsyncadd %s849, 0
          %s883 = smul.addr %s31, 16
          %s884 = sadd.s32 %s880, %s883
          %s885 = smul.addr %s884, 4
          %s886 = scalar_lea.hbm %s4, %s885
          %s887 = sshll.u32 %s852, 4
          %s888 = int_to_ptr.vmem [resolvable:$true] %s887
          %s889 = sshll.u32 %s886, 4
          %s890 = int_to_ptr.hbm [resolvable:$true] %s889
          %895 = dma.vmem_to_hbm [thread:$0]  %s888, 1024, %s890, %s849, 64, 64, 4
        $region52: #{tpu_custom_call.1} parent=31 // pred_fallthru
          _
        // Predicated region
        $region53: #{tpu_custom_call.1} parent=31 // pred_check
          %p896 = pneg %p185
        $region54: #{tpu_custom_call.1} parent=31 // pred_check_branch
          %898 = sbr.rel (%p896) target = $region56
        $region55: #{tpu_custom_call.1} parent=31 // pred_region
          %s899 = smul.u32 16, %s32
          %901 = vsyncadd %s854, 0
          %s902 = smul.addr %s31, 16
          %s903 = sadd.s32 %s899, %s902
          %s904 = smul.addr %s903, 4
          %s905 = scalar_lea.hbm %s5, %s904
          %s906 = sshll.u32 %s857, 4
          %s907 = int_to_ptr.vmem [resolvable:$true] %s906
          %s908 = sshll.u32 %s905, 4
          %s909 = int_to_ptr.hbm [resolvable:$true] %s908
          %914 = dma.vmem_to_hbm [thread:$0]  %s907, 1024, %s909, %s854, 64, 64, 4
        $region56: #{tpu_custom_call.1} parent=31 // pred_fallthru
          _
      $region32: #{tpu_custom_call.1} parent=5 // pred_fallthru
        _
      %p915 = scmp.le.s32.totalorder 2, %s22
      // Predicated region
      $region57: #{tpu_custom_call.1} parent=5 // pred_check
        %p916 = pneg %p915
      $region58: #{tpu_custom_call.1} parent=5 // pred_check_branch
        %918 = sbr.rel (%p916) target = $region60
      $region59: #{tpu_custom_call.1} parent=5 // pred_region
        %s919 = ssub.s32 %s22, 2
        // Predicated region
        $region61: #{tpu_custom_call.1} parent=59 // pred_check
          %p920 = pneg %p135
        $region62: #{tpu_custom_call.1} parent=59 // pred_check_branch
          %922 = sbr.rel (%p920) target = $region64
        $region63: #{tpu_custom_call.1} parent=59 // pred_region
          %s923 = sand.u32 %s120, 1
          %s924 = scalar_lea.sflag [#allocation4], %s923
          %s925 = sand.u32 %s120, 1
          %s926 = smul.addr %s925, 64
          %s927 = scalar_lea.vmem [#allocation8], %s926
          %929 = dma.done %s924, 1024
        $region64: #{tpu_custom_call.1} parent=59 // pred_fallthru
          _
        // Predicated region
        $region65: #{tpu_custom_call.1} parent=59 // pred_check
          %p930 = pneg %p163
        $region66: #{tpu_custom_call.1} parent=59 // pred_check_branch
          %932 = sbr.rel (%p930) target = $region68
        $region67: #{tpu_custom_call.1} parent=59 // pred_region
          %s933 = sand.u32 %s28, 1
          %s934 = scalar_lea.sflag [#allocation10], %s933
          %s935 = sand.u32 %s148, 1
          %s936 = smul.addr %s935, 64
          %s937 = scalar_lea.vmem [#allocation9], %s936
          %939 = dma.done %s934, 1024
        $region68: #{tpu_custom_call.1} parent=59 // pred_fallthru
          _
        // Predicated region
        $region69: #{tpu_custom_call.1} parent=59 // pred_check
          %p940 = pneg %p191
        $region70: #{tpu_custom_call.1} parent=59 // pred_check_branch
          %942 = sbr.rel (%p940) target = $region72
        $region71: #{tpu_custom_call.1} parent=59 // pred_region
          %s943 = sand.u32 %s28, 1
          %s944 = scalar_lea.sflag [#allocation10], %s943
          %s945 = sand.u32 %s176, 1
          %s946 = smul.addr %s945, 64
          %s947 = scalar_lea.vmem [#allocation11], %s946
          %949 = dma.done %s944, 1024
        $region72: #{tpu_custom_call.1} parent=59 // pred_fallthru
          _
      $region60: #{tpu_custom_call.1} parent=5 // pred_fallthru
        _
    $region6: #{tpu_custom_call.1} parent=1 // loop_footer
      %s26 = sadd.s32 1, %s22
    $region7: #{tpu_custom_call.1} parent=1 // loop_footer_branch
      %21 = sbr.rel target = $region3
    $region8: #{tpu_custom_call.1} parent=1 // loop_exit
      _
    %950 = vsyncpa [#allocation3], 1
    %s951 = scalar_lea.sflag [#allocation3], 1
    %952 = vsyncpa %s951, 1
    %953 = vsyncpa [#allocation6], 1
    %954 = vsyncpa [#allocation4], 1
    %s955 = scalar_lea.sflag [#allocation4], 1
    %956 = vsyncpa %s955, 1
    %957 = vsyncpa [#allocation10], 1
    %s958 = scalar_lea.sflag [#allocation10], 1
    %959 = vsyncpa %s958, 1

</llo_original>
